<compile_context>
chip_gen: v6e
topology: v6e:2x2x1
jax: 0.10.0
libtpu: 0.0.40
codegen_flags: <defaults>
</compile_context>

<pallas_src>
import jax
import jax.numpy as jnp
from jax.experimental import pallas as pl
from jax.experimental.pallas import tpu as pltpu

NUM_CHANNELS = 133              # hard-coded in the PyTorch module
_LANE = 128                     # TPU lane width
_SMALL_BYTES_FALLBACK = 2 * 1024 * 1024   # < ~2 MiB moved: XLA transpose wins


def _flatten_permute_kernel(x_ref, o_ref):
    # x_ref: (C, TS) VMEM tile;  o_ref: (TS, C) VMEM tile (batch dim squeezed).
    # Pure XLU transpose; no arithmetic.
    o_ref[...] = x_ref[...].T


def _default_tile(itemsize):
    # 2048 for f32, 4096 for 16-bit dtypes -> 8-16 KB strided strips per DMA.
    return 4096 if itemsize <= 2 else 2048


def _on_v7x():
    try:
        return "v7" in jax.devices()[0].device_kind.lower()
    except Exception:
        return False


def flatten_forward(x, *, tile_s=None, force_pallas=False):
    """Equivalent of x.view(B, 133, -1).permute(0, 2, 1)."""
    B = x.shape[0]
    C = NUM_CHANNELS
    x3 = x.reshape(B, C, -1)          # glue: view(B, 133, -1)
    S = x3.shape[-1]
    itemsize = jnp.dtype(x.dtype).itemsize
    total_bytes = B * C * S * itemsize

    # Small-problem fast path (bytes-based): launch + per-step overhead
    # dominates tiny copies; XLA's native transpose wins there.
    if not force_pallas and total_bytes < _SMALL_BYTES_FALLBACK:
        return jnp.transpose(x3, (0, 2, 1))

    if tile_s is None:
        tile_s = _default_tile(itemsize)

    if S <= tile_s:
        ts = S                                        # single full-S tile (always legal)
    else:
        ts = max(_LANE, (tile_s // _LANE) * _LANE)    # lane-aligned tile (mult of 128)

    grid = (B, pl.cdiv(S, ts))

    def _call(dim_sem):
        return pl.pallas_call(
            _flatten_permute_kernel,
            out_shape=jax.ShapeDtypeStruct((B, S, C), x.dtype),
            grid_spec=pltpu.PrefetchScalarGridSpec(
                num_scalar_prefetch=0,
                grid=grid,
                # Batch dim squeezed (None) -> kernel sees clean 2-D tiles.
                in_specs=[pl.BlockSpec((None, C, ts), lambda b, s: (b, 0, s))],
                out_specs=pl.BlockSpec((None, ts, C), lambda b, s: (b, s, 0)),
            ),
            compiler_params=pltpu.CompilerParams(
                dimension_semantics=dim_sem,
                vmem_limit_bytes=32 * 1024 * 1024,
            ),
            # Pure-bandwidth op: read + write the full tensor once each.
            cost_estimate=pl.CostEstimate(
                flops=0, transcendentals=0, bytes_accessed=2 * total_bytes),
        )(x3)

    # v7x only: shard the S-tile axis across the 2 TensorCores (doubles vst /
    # XLU / DMA-issue capacity for the masked 133-lane stores).  Fall back
    # gracefully if the combination is unsupported on the installed toolchain.
    if _on_v7x() and grid[1] > 1:
        try:
            return _call((pltpu.ARBITRARY, pltpu.CORE_PARALLEL))
        except Exception:
            pass
    return _call(("parallel", "parallel"))


if __name__ == "__main__":
    key = jax.random.PRNGKey(0)
    k1, k2, k3 = jax.random.split(key, 3)

    # Test 1: small canonical shape, forced through the Pallas kernel.
    B, C, H, W = 2, NUM_CHANNELS, 16, 16          # S = 256 -> single (133, 256) tile
    x = jax.random.normal(k1, (B, C, H, W), dtype=jnp.float32)
    out = jax.block_until_ready(flatten_forward(x, force_pallas=True))
    ref = jnp.transpose(x.reshape(B, C, H * W), (0, 2, 1))
    assert out.shape == (B, H * W, C), out.shape
    assert out.dtype == x.dtype
    assert jnp.array_equal(out, ref), "mismatch vs reference (test 1)"

    # Test 2: S not a multiple of the tile -> exercises the partial tail block.
    H2, W2 = 24, 25                               # S = 600, tile 512 -> tail of 88
    x2 = jax.random.normal(k2, (B, C, H2, W2), dtype=jnp.float32)
    out2 = jax.block_until_ready(flatten_forward(x2, tile_s=512, force_pallas=True))
    ref2 = jnp.transpose(x2.reshape(B, C, H2 * W2), (0, 2, 1))
    assert jnp.array_equal(out2, ref2), "mismatch vs reference (test 2, tail tile)"

    # Test 3: bf16 path (C=133 is not a multiple of the 16-row bf16 sublane
    # tile -> verify numerics/relayout through the kernel).
    xb = jax.random.normal(k3, (B, C, 8, 8), dtype=jnp.bfloat16)
    out3 = jax.block_until_ready(flatten_forward(xb, force_pallas=True))
    ref3 = jnp.transpose(xb.reshape(B, C, 64), (0, 2, 1))
    assert out3.dtype == jnp.bfloat16
    assert jnp.array_equal(out3, ref3), "mismatch vs reference (test 3, bf16)"

    # Test 4: default dispatch (tiny bytes moved) uses the XLA-transpose fallback.
    out4 = jax.block_until_ready(flatten_forward(x))
    assert jnp.array_equal(out4, ref), "mismatch vs reference (test 4, fallback)"

    print("KERNEL_OK")
</pallas_src>

<mosaic_0001>
module attributes {stable_mosaic.version = 11 : i64} {
  func.func @_flatten_permute_kernel(%arg0: i32, %arg1: i32, %arg2: memref<1x133x256xf32, #tpu.memory_space<vmem>>, %arg3: memref<1x256x133xf32, #tpu.memory_space<vmem>>) attributes {dimension_semantics = [#tpu.dimension_semantics<parallel>, #tpu.dimension_semantics<parallel>], iteration_bounds = array<i64: 2, 1>, scalar_prefetch = 0 : i64, scratch_operands = 0 : i64, tpu.core_type = #tpu.core_type<tc>, window_params = [{transform_indices = @transform_0, window_bounds = array<i64: 1, 133, 256>}, {transform_indices = @transform_1, window_bounds = array<i64: 1, 256, 133>}]} {
    %c0 = arith.constant 0 : index
    %c0_0 = arith.constant 0 : index
    %c0_1 = arith.constant 0 : index
    %0 = vector.load %arg2[%c0, %c0_0, %c0_1] : memref<1x133x256xf32, #tpu.memory_space<vmem>>, vector<1x133x256xf32>
    %1 = vector.shape_cast %0 : vector<1x133x256xf32> to vector<133x256xf32>
    %2 = tpu.transpose %1, [1, 0] : vector<133x256xf32> -> vector<256x133xf32>
    %c0_2 = arith.constant 0 : index
    %c0_3 = arith.constant 0 : index
    %c0_4 = arith.constant 0 : index
    %3 = vector.load %arg3[%c0_2, %c0_3, %c0_4] : memref<1x256x133xf32, #tpu.memory_space<vmem>>, vector<1x256x133xf32>
    %4 = vector.shape_cast %3 : vector<1x256x133xf32> to vector<256x133xf32>
    %5 = vector.shape_cast %2 : vector<256x133xf32> to vector<1x256x133xf32>
    tpu.vector_store %arg3[%c0_2, %c0_3, %c0_4], %5 {strides = array<i32>} : memref<1x256x133xf32, #tpu.memory_space<vmem>>, vector<1x256x133xf32>,
    return
  }
  func.func @transform_0(%arg0: i32, %arg1: i32) -> (i32, i32, i32) {
    %c0_i32 = arith.constant 0 : i32
    %c0_i32_0 = arith.constant 0 : i32
    return %arg0, %c0_i32, %arg1 : i32, i32, i32
  }
  func.func @transform_1(%arg0: i32, %arg1: i32) -> (i32, i32, i32) {
    %c0_i32 = arith.constant 0 : i32
    %c0_i32_0 = arith.constant 0 : i32
    return %arg0, %arg1, %c0_i32 : i32, i32, i32
  }
}

</mosaic_0001>

<llo_original>
// kernel: tpu_custom_call.1
$region0: #{tpu_custom_call.1}
  #allocation0 [shape = 'u32[]', space=smem, size = 0x4, offset = 0x4, fixed_abs, tag = 'smem constant byte address 0x4 - core index']
  #allocation1 [shape = 'u32[144,128]{1,0:T(1,128)}', space=vmem, size = 0x12000, scoped, tag = 'internal scratch']
  %s0 = inlined_call_operand.vmem [shape: f32[2,133,256], index: 0, kind: input, shape index: {}]
  %s1 = inlined_call_operand.vmem [shape: f32[2,256,133], index: 1, kind: output, shape index: {}]
  %s2 = sld [smem:[#allocation0]]
  $region37: #{tpu_custom_call.1} parent=0
    _
  %s4 = ssub.s32 1, %s2
  %s5 = scalar_select 0, %s4, %s2
  loop: start=0, step=1, limit=4
  $region2: #{tpu_custom_call.1} parent=0 // loop_pre_header
    _
  $region3: #{tpu_custom_call.1} parent=0 // loop_header
    %s7 = sphi 0, %s11
    %p8 = scmp.ge.s32.totalorder %s7, 4
    %s14 = sphi 0, %s26
    %s15 = sphi 0, %s22
    %s16 = sphi 0, %s14
    %s17 = sphi 0, %s15
    %s18 = sphi 0, %s16
    %s19 = sphi 0, %s17
    %s31 = sphi 0, %s33
    %s34 = sphi 0, %s31
    %s35 = sphi 0, %s34
    %s51 = sphi 0, %s35
    %s59 = sphi 0, %s61
    %s62 = sphi 0, %s59
    %s63 = sphi 0, %s62
    %s79 = sphi 0, %s63
  $region4: #{tpu_custom_call.1} parent=0 // loop_header_branch
    %10 = sbr.rel (%p8) target = $region8
  $region5: #{tpu_custom_call.1} parent=0 // loop_body
    %s12 = ssub.s32 %s7, 1
    %s13 = ssub.s32 %s7, 2
    %s20 = sadd.s32 1, %s15
    %p21 = scmp.ge.s32.totalorder %s20, 1
    %s22 = scalar_select %p21, 0, %s20
    %s23 = sadd.s32 1, %s14
    %s24 = scalar_select %p21, %s23, %s14
    %p25 = scmp.ge.s32.totalorder %s24, 2
    %s26 = scalar_select %p25, 0, %s24
    %s27 = ssub.s32 %s14, %s26
    %s28 = ssub.s32 %s15, %s22
    %s29 = sor.u32 %s27, %s28
    %p30 = scmp.eq.s32.totalorder %s29, 0
    %s32 = sadd.s32 %s31, 1
    %s33 = scalar_select %p30, %s31, %s32
    %p36 = pneg %p30
    %p37 = scmp.eq.s32.totalorder %s7, 1
    %p38 = por %p36, %p37
    %p39 = scmp.ne.s32.totalorder %s31, %s34
    %p40 = scmp.eq.s32.totalorder %s7, 0
    %p41 = por %p39, %p40
    %p42 = scmp.ne.s32.totalorder %s31, %s34
    %p43 = scmp.eq.s32.totalorder %s12, 1
    %p44 = por %p42, %p43
    %p45 = scmp.ne.s32.totalorder %s34, %s35
    %p46 = scmp.eq.s32.totalorder %s12, 0
    %p47 = por %p45, %p46
    %p48 = scmp.ne.s32.totalorder %s34, %s35
    %p49 = scmp.eq.s32.totalorder %s13, 1
    %p50 = por %p48, %p49
    %p52 = scmp.ne.s32.totalorder %s35, %s51
    %p53 = scmp.eq.s32.totalorder %s13, 0
    %p54 = por %p52, %p53
    %s55 = ssub.s32 %s14, %s26
    %s56 = ssub.s32 %s15, %s22
    %s57 = sor.u32 %s55, %s56
    %p58 = scmp.eq.s32.totalorder %s57, 0
    %s60 = sadd.s32 %s59, 1
    %s61 = scalar_select %p58, %s59, %s60
    %p64 = pneg %p58
    %p65 = scmp.eq.s32.totalorder %s7, 1
    %p66 = por %p64, %p65
    %p67 = scmp.ne.s32.totalorder %s59, %s62
    %p68 = scmp.eq.s32.totalorder %s7, 0
    %p69 = por %p67, %p68
    %p70 = scmp.ne.s32.totalorder %s59, %s62
    %p71 = scmp.eq.s32.totalorder %s12, 1
    %p72 = por %p70, %p71
    %p73 = scmp.ne.s32.totalorder %s62, %s63
    %p74 = scmp.eq.s32.totalorder %s12, 0
    %p75 = por %p73, %p74
    %p76 = scmp.ne.s32.totalorder %s62, %s63
    %p77 = scmp.eq.s32.totalorder %s13, 1
    %p78 = por %p76, %p77
    %p80 = scmp.ne.s32.totalorder %s63, %s79
    %p81 = scmp.eq.s32.totalorder %s13, 0
    %p82 = por %p80, %p81
    %p83 = scmp.le.s32.totalorder 1, %s7
    %p84 = scmp.lt.s32.totalorder %s7, 3
    %p85 = pnand %p83, %p84
    %p86 = pneg %p85
    // Predicated region
    $region9: #{tpu_custom_call.1} parent=5 // pred_check
      _
    $region10: #{tpu_custom_call.1} parent=5 // pred_check_branch
      %88 = sbr.rel (%p85) target = $region12
    $region11: #{tpu_custom_call.1} parent=5 // pred_region
      %s89 = ssub.s32 %s7, 1
    $region12: #{tpu_custom_call.1} parent=5 // pred_fallthru
      _
    %p90 = scmp.lt.s32.totalorder %s7, 2
    // Predicated region
    $region13: #{tpu_custom_call.1} parent=5 // pred_check
      %p91 = pneg %p90
    $region14: #{tpu_custom_call.1} parent=5 // pred_check_branch
      %93 = sbr.rel (%p91) target = $region16
    $region15: #{tpu_custom_call.1} parent=5 // pred_region
      // Predicated region
      $region17: #{tpu_custom_call.1} parent=15 // pred_check
        %p94 = pneg %p41
      $region18: #{tpu_custom_call.1} parent=15 // pred_check_branch
        %96 = sbr.rel (%p94) target = $region20
      $region19: #{tpu_custom_call.1} parent=15 // pred_region
        %s97 = smul.u32 2, %s15
        %p98 = scmp.lt.s32.totalorder %s14, 1
        %s99 = scalar_select %p98, %s14, 1
        %p100 = scmp.lt.s32.totalorder %s97, 1
        %s101 = scalar_select %p100, %s97, 1
        %s102 = smul.addr %s99, 34
        %s103 = sadd.s32 %s101, %s102
        %s104 = smul.addr %s103, 8
        %s105 = scalar_lea.vmem %s0, %s104
        %s106 = smul.u32 2, %s15
      $region20: #{tpu_custom_call.1} parent=15 // pred_fallthru
        _
    $region16: #{tpu_custom_call.1} parent=5 // pred_fallthru
      _
    %p107 = scmp.le.s32.totalorder 1, %s7
    %p108 = scmp.lt.s32.totalorder %s7, 3
    %p109 = pnand %p107, %p108
    %p110 = pneg %p109
    // Predicated region
    $region21: #{tpu_custom_call.1} parent=5 // pred_check
      _
    $region22: #{tpu_custom_call.1} parent=5 // pred_check_branch
      %112 = sbr.rel (%p109) target = $region24
    $region23: #{tpu_custom_call.1} parent=5 // pred_region
      %s113 = ssub.s32 %s7, 1
      %s114 = smul.u32 2, %s17
      %p115 = scmp.lt.s32.totalorder %s16, 1
      %s116 = scalar_select %p115, %s16, 1
      %p117 = scmp.lt.s32.totalorder %s114, 1
      %s118 = scalar_select %p117, %s114, 1
      %s119 = smul.addr %s116, 34
      %s120 = sadd.s32 %s118, %s119
      %s121 = smul.addr %s120, 8
      %s122 = scalar_lea.vmem %s0, %s121
      %p123 = pneg %p47
      %p124 = pneg %p44
      %p125 = pneg %p75
      %p126 = pneg %p72
      %s127 = smul.u32 32, %s17
      %p128 = scmp.lt.s32.totalorder %s16, 1
      %s129 = scalar_select %p128, %s16, 1
      %p130 = scmp.lt.s32.totalorder %s127, 31
      %s131 = scalar_select %p130, %s127, 31
      %s132 = smul.addr %s131, 2
      %s133 = smul.addr %s129, 64
      %s134 = sadd.s32 %s132, %s133
      %s135 = smul.addr %s134, 8
      %s136 = scalar_lea.vmem %s1, %s135
      %s137 = smul.u32 2, %s17
      %p138 = scmp.lt.s32.totalorder %s16, 1
      %s139 = scalar_select %p138, %s16, 1
      %p140 = scmp.lt.s32.totalorder %s137, 1
      %s141 = scalar_select %p140, %s137, 1
      %s142 = smul.addr %s139, 34
      %s143 = sadd.s32 %s141, %s142
      %s144 = smul.addr %s143, 8
      %s145 = scalar_lea.vmem %s0, %s144
      %s146 = smul.u32 2, %s17
      %s147 = smul.u32 32, %s17
      %p148 = scmp.lt.s32.totalorder %s16, 1
      %s149 = scalar_select %p148, %s16, 1
      %p150 = scmp.lt.s32.totalorder %s147, 31
      %s151 = scalar_select %p150, %s147, 31
      %s152 = smul.addr %s151, 2
      %s153 = smul.addr %s149, 64
      %s154 = sadd.s32 %s152, %s153
      %s155 = smul.addr %s154, 8
      %s156 = scalar_lea.vmem %s1, %s155
      %s157 = smul.u32 32, %s17
      %v158 = vld [vmem:[%s145] sm:$0xff]
      %v159 = vld [vmem:[%s145 + $0x8] sm:$0xff]
      %v160 = vld [vmem:[%s145 + $0x10] sm:$0xff]
      %v161 = vld [vmem:[%s145 + $0x18] sm:$0xff]
      %v162 = vld [vmem:[%s145 + $0x20] sm:$0xff]
      %v163 = vld [vmem:[%s145 + $0x28] sm:$0xff]
      %v164 = vld [vmem:[%s145 + $0x30] sm:$0xff]
      %v165 = vld [vmem:[%s145 + $0x38] sm:$0xff]
      %v166 = vld [vmem:[%s145 + $0x40] sm:$0xff]
      %v167 = vld [vmem:[%s145 + $0x48] sm:$0xff]
      %v168 = vld [vmem:[%s145 + $0x50] sm:$0xff]
      %v169 = vld [vmem:[%s145 + $0x58] sm:$0xff]
      %v170 = vld [vmem:[%s145 + $0x60] sm:$0xff]
      %v171 = vld [vmem:[%s145 + $0x68] sm:$0xff]
      %v172 = vld [vmem:[%s145 + $0x70] sm:$0xff]
      %v173 = vld [vmem:[%s145 + $0x78] sm:$0xff]
      %v174 = vld [vmem:[%s145 + $0x80] sm:$0xff]
      %v175 = vld [vmem:[%s145 + $0x88] sm:$0xff]
      %v176 = vld [vmem:[%s145 + $0x90] sm:$0xff]
      %v177 = vld [vmem:[%s145 + $0x98] sm:$0xff]
      %v178 = vld [vmem:[%s145 + $0xa0] sm:$0xff]
      %v179 = vld [vmem:[%s145 + $0xa8] sm:$0xff]
      %v180 = vld [vmem:[%s145 + $0xb0] sm:$0xff]
      %v181 = vld [vmem:[%s145 + $0xb8] sm:$0xff]
      %v182 = vld [vmem:[%s145 + $0xc0] sm:$0xff]
      %v183 = vld [vmem:[%s145 + $0xc8] sm:$0xff]
      %v184 = vld [vmem:[%s145 + $0xd0] sm:$0xff]
      %v185 = vld [vmem:[%s145 + $0xd8] sm:$0xff]
      %v186 = vld [vmem:[%s145 + $0xe0] sm:$0xff]
      %v187 = vld [vmem:[%s145 + $0xe8] sm:$0xff]
      %v188 = vld [vmem:[%s145 + $0xf0] sm:$0xff]
      %v189 = vld [vmem:[%s145 + $0xf8] sm:$0xff]
      %v190 = vld [vmem:[%s145 + $0x100] sm:$0x1f]
      %v191 = vld [vmem:[%s145 + $0x108] sm:$0x1f]
      %192 = vxpose.xlu0.b32.start [1/16] %v158, 128
      %193 = vxpose.xlu0.b32.cont [2/16] %v160, 128
      %194 = vxpose.xlu0.b32.cont [3/16] %v162, 128
      %195 = vxpose.xlu0.b32.cont [4/16] %v164, 128
      %196 = vxpose.xlu0.b32.cont [5/16] %v166, 128
      %197 = vxpose.xlu0.b32.cont [6/16] %v168, 128
      %198 = vxpose.xlu0.b32.cont [7/16] %v170, 128
      %199 = vxpose.xlu0.b32.cont [8/16] %v172, 128
      %200 = vxpose.xlu0.b32.cont [9/16] %v174, 128
      %201 = vxpose.xlu0.b32.cont [10/16] %v176, 128
      %202 = vxpose.xlu0.b32.cont [11/16] %v178, 128
      %203 = vxpose.xlu0.b32.cont [12/16] %v180, 128
      %204 = vxpose.xlu0.b32.cont [13/16] %v182, 128
      %205 = vxpose.xlu0.b32.cont [14/16] %v184, 128
      %206 = vxpose.xlu0.b32.cont [15/16] %v186, 128
      %207 = vxpose.xlu0.b32.end [16/16] %v188, 128
      %v208 = vpop.trf.xlu0
      %v209 = vpop.trf.xlu0
      %v210 = vpop.trf.xlu0
      %v211 = vpop.trf.xlu0
      %v212 = vpop.trf.xlu0
      %v213 = vpop.trf.xlu0
      %v214 = vpop.trf.xlu0
      %v215 = vpop.trf.xlu0
      %v216 = vpop.trf.xlu0
      %v217 = vpop.trf.xlu0
      %v218 = vpop.trf.xlu0
      %v219 = vpop.trf.xlu0
      %v220 = vpop.trf.xlu0
      %v221 = vpop.trf.xlu0
      %v222 = vpop.trf.xlu0
      %v223 = vpop.trf.xlu0
      %224 = vxpose.xlu0.b32.start [1/16] %v159, 128
      %225 = vxpose.xlu0.b32.cont [2/16] %v161, 128
      %226 = vxpose.xlu0.b32.cont [3/16] %v163, 128
      %227 = vxpose.xlu0.b32.cont [4/16] %v165, 128
      %228 = vxpose.xlu0.b32.cont [5/16] %v167, 128
      %229 = vxpose.xlu0.b32.cont [6/16] %v169, 128
      %230 = vxpose.xlu0.b32.cont [7/16] %v171, 128
      %231 = vxpose.xlu0.b32.cont [8/16] %v173, 128
      %232 = vxpose.xlu0.b32.cont [9/16] %v175, 128
      %233 = vxpose.xlu0.b32.cont [10/16] %v177, 128
      %234 = vxpose.xlu0.b32.cont [11/16] %v179, 128
      %235 = vxpose.xlu0.b32.cont [12/16] %v181, 128
      %236 = vxpose.xlu0.b32.cont [13/16] %v183, 128
      %237 = vxpose.xlu0.b32.cont [14/16] %v185, 128
      %238 = vxpose.xlu0.b32.cont [15/16] %v187, 128
      %239 = vxpose.xlu0.b32.end [16/16] %v189, 128
      %v240 = vpop.trf.xlu0
      %v241 = vpop.trf.xlu0
      %v242 = vpop.trf.xlu0
      %v243 = vpop.trf.xlu0
      %v244 = vpop.trf.xlu0
      %v245 = vpop.trf.xlu0
      %v246 = vpop.trf.xlu0
      %v247 = vpop.trf.xlu0
      %v248 = vpop.trf.xlu0
      %v249 = vpop.trf.xlu0
      %v250 = vpop.trf.xlu0
      %v251 = vpop.trf.xlu0
      %v252 = vpop.trf.xlu0
      %v253 = vpop.trf.xlu0
      %v254 = vpop.trf.xlu0
      %v255 = vpop.trf.xlu0
      %256 = vxpose.xlu0.b32.start [1/16] %v190, 128
      %257 = vxpose.xlu0.b32.cont [2/16] 0.0, 128
      %258 = vxpose.xlu0.b32.cont [3/16] 0.0, 128
      %259 = vxpose.xlu0.b32.cont [4/16] 0.0, 128
      %260 = vxpose.xlu0.b32.cont [5/16] 0.0, 128
      %261 = vxpose.xlu0.b32.cont [6/16] 0.0, 128
      %262 = vxpose.xlu0.b32.cont [7/16] 0.0, 128
      %263 = vxpose.xlu0.b32.cont [8/16] 0.0, 128
      %264 = vxpose.xlu0.b32.cont [9/16] 0.0, 128
      %265 = vxpose.xlu0.b32.cont [10/16] 0.0, 128
      %266 = vxpose.xlu0.b32.cont [11/16] 0.0, 128
      %267 = vxpose.xlu0.b32.cont [12/16] 0.0, 128
      %268 = vxpose.xlu0.b32.cont [13/16] 0.0, 128
      %269 = vxpose.xlu0.b32.cont [14/16] 0.0, 128
      %270 = vxpose.xlu0.b32.cont [15/16] 0.0, 128
      %271 = vxpose.xlu0.b32.end [16/16] 0.0, 128
      %v272 = vpop.trf.xlu0
      %v273 = vpop.trf.xlu0
      %v274 = vpop.trf.xlu0
      %v275 = vpop.trf.xlu0
      %v276 = vpop.trf.xlu0
      %v277 = vpop.trf.xlu0
      %v278 = vpop.trf.xlu0
      %v279 = vpop.trf.xlu0
      %v280 = vpop.trf.xlu0
      %v281 = vpop.trf.xlu0
      %v282 = vpop.trf.xlu0
      %v283 = vpop.trf.xlu0
      %v284 = vpop.trf.xlu0
      %v285 = vpop.trf.xlu0
      %v286 = vpop.trf.xlu0
      %v287 = vpop.trf.xlu0
      %288 = vxpose.xlu0.b32.start [1/16] %v191, 128
      %289 = vxpose.xlu0.b32.cont [2/16] 0.0, 128
      %290 = vxpose.xlu0.b32.cont [3/16] 0.0, 128
      %291 = vxpose.xlu0.b32.cont [4/16] 0.0, 128
      %292 = vxpose.xlu0.b32.cont [5/16] 0.0, 128
      %293 = vxpose.xlu0.b32.cont [6/16] 0.0, 128
      %294 = vxpose.xlu0.b32.cont [7/16] 0.0, 128
      %295 = vxpose.xlu0.b32.cont [8/16] 0.0, 128
      %296 = vxpose.xlu0.b32.cont [9/16] 0.0, 128
      %297 = vxpose.xlu0.b32.cont [10/16] 0.0, 128
      %298 = vxpose.xlu0.b32.cont [11/16] 0.0, 128
      %299 = vxpose.xlu0.b32.cont [12/16] 0.0, 128
      %300 = vxpose.xlu0.b32.cont [13/16] 0.0, 128
      %301 = vxpose.xlu0.b32.cont [14/16] 0.0, 128
      %302 = vxpose.xlu0.b32.cont [15/16] 0.0, 128
      %303 = vxpose.xlu0.b32.end [16/16] 0.0, 128
      %v304 = vpop.trf.xlu0
      %v305 = vpop.trf.xlu0
      %v306 = vpop.trf.xlu0
      %v307 = vpop.trf.xlu0
      %v308 = vpop.trf.xlu0
      %v309 = vpop.trf.xlu0
      %v310 = vpop.trf.xlu0
      %v311 = vpop.trf.xlu0
      %v312 = vpop.trf.xlu0
      %v313 = vpop.trf.xlu0
      %v314 = vpop.trf.xlu0
      %v315 = vpop.trf.xlu0
      %v316 = vpop.trf.xlu0
      %v317 = vpop.trf.xlu0
      %v318 = vpop.trf.xlu0
      %v319 = vpop.trf.xlu0
      %320 = vst [vmem:[%s156] sm:$0xff] %v208
      %vm321 = vcmask 39936
      %322 = vst.msk [vmem:[%s156 + $0x8] sm:$0xff] %vm321, %v272
      %323 = vst [vmem:[%s156 + $0x10] sm:$0xff] %v209
      %324 = vst.msk [vmem:[%s156 + $0x18] sm:$0xff] %vm321, %v273
      %325 = vst [vmem:[%s156 + $0x20] sm:$0xff] %v210
      %326 = vst.msk [vmem:[%s156 + $0x28] sm:$0xff] %vm321, %v274
      %327 = vst [vmem:[%s156 + $0x30] sm:$0xff] %v211
      %328 = vst.msk [vmem:[%s156 + $0x38] sm:$0xff] %vm321, %v275
      %329 = vst [vmem:[%s156 + $0x40] sm:$0xff] %v212
      %330 = vst.msk [vmem:[%s156 + $0x48] sm:$0xff] %vm321, %v276
      %331 = vst [vmem:[%s156 + $0x50] sm:$0xff] %v213
      %332 = vst.msk [vmem:[%s156 + $0x58] sm:$0xff] %vm321, %v277
      %333 = vst [vmem:[%s156 + $0x60] sm:$0xff] %v214
      %334 = vst.msk [vmem:[%s156 + $0x68] sm:$0xff] %vm321, %v278
      %335 = vst [vmem:[%s156 + $0x70] sm:$0xff] %v215
      %336 = vst.msk [vmem:[%s156 + $0x78] sm:$0xff] %vm321, %v279
      %337 = vst [vmem:[%s156 + $0x80] sm:$0xff] %v216
      %338 = vst.msk [vmem:[%s156 + $0x88] sm:$0xff] %vm321, %v280
      %339 = vst [vmem:[%s156 + $0x90] sm:$0xff] %v217
      %340 = vst.msk [vmem:[%s156 + $0x98] sm:$0xff] %vm321, %v281
      %341 = vst [vmem:[%s156 + $0xa0] sm:$0xff] %v218
      %342 = vst.msk [vmem:[%s156 + $0xa8] sm:$0xff] %vm321, %v282
      %343 = vst [vmem:[%s156 + $0xb0] sm:$0xff] %v219
      %344 = vst.msk [vmem:[%s156 + $0xb8] sm:$0xff] %vm321, %v283
      %345 = vst [vmem:[%s156 + $0xc0] sm:$0xff] %v220
      %346 = vst.msk [vmem:[%s156 + $0xc8] sm:$0xff] %vm321, %v284
      %347 = vst [vmem:[%s156 + $0xd0] sm:$0xff] %v221
      %348 = vst.msk [vmem:[%s156 + $0xd8] sm:$0xff] %vm321, %v285
      %349 = vst [vmem:[%s156 + $0xe0] sm:$0xff] %v222
      %350 = vst.msk [vmem:[%s156 + $0xe8] sm:$0xff] %vm321, %v286
      %351 = vst [vmem:[%s156 + $0xf0] sm:$0xff] %v223
      %352 = vst.msk [vmem:[%s156 + $0xf8] sm:$0xff] %vm321, %v287
      %353 = vst [vmem:[%s156 + $0x100] sm:$0xff] %v240
      %354 = vst.msk [vmem:[%s156 + $0x108] sm:$0xff] %vm321, %v304
      %355 = vst [vmem:[%s156 + $0x110] sm:$0xff] %v241
      %356 = vst.msk [vmem:[%s156 + $0x118] sm:$0xff] %vm321, %v305
      %357 = vst [vmem:[%s156 + $0x120] sm:$0xff] %v242
      %358 = vst.msk [vmem:[%s156 + $0x128] sm:$0xff] %vm321, %v306
      %359 = vst [vmem:[%s156 + $0x130] sm:$0xff] %v243
      %360 = vst.msk [vmem:[%s156 + $0x138] sm:$0xff] %vm321, %v307
      %361 = vst [vmem:[%s156 + $0x140] sm:$0xff] %v244
      %362 = vst.msk [vmem:[%s156 + $0x148] sm:$0xff] %vm321, %v308
      %363 = vst [vmem:[%s156 + $0x150] sm:$0xff] %v245
      %364 = vst.msk [vmem:[%s156 + $0x158] sm:$0xff] %vm321, %v309
      %365 = vst [vmem:[%s156 + $0x160] sm:$0xff] %v246
      %366 = vst.msk [vmem:[%s156 + $0x168] sm:$0xff] %vm321, %v310
      %367 = vst [vmem:[%s156 + $0x170] sm:$0xff] %v247
      %368 = vst.msk [vmem:[%s156 + $0x178] sm:$0xff] %vm321, %v311
      %369 = vst [vmem:[%s156 + $0x180] sm:$0xff] %v248
      %370 = vst.msk [vmem:[%s156 + $0x188] sm:$0xff] %vm321, %v312
      %371 = vst [vmem:[%s156 + $0x190] sm:$0xff] %v249
      %372 = vst.msk [vmem:[%s156 + $0x198] sm:$0xff] %vm321, %v313
      %373 = vst [vmem:[%s156 + $0x1a0] sm:$0xff] %v250
      %374 = vst.msk [vmem:[%s156 + $0x1a8] sm:$0xff] %vm321, %v314
      %375 = vst [vmem:[%s156 + $0x1b0] sm:$0xff] %v251
      %376 = vst.msk [vmem:[%s156 + $0x1b8] sm:$0xff] %vm321, %v315
      %377 = vst [vmem:[%s156 + $0x1c0] sm:$0xff] %v252
      %378 = vst.msk [vmem:[%s156 + $0x1c8] sm:$0xff] %vm321, %v316
      %379 = vst [vmem:[%s156 + $0x1d0] sm:$0xff] %v253
      %380 = vst.msk [vmem:[%s156 + $0x1d8] sm:$0xff] %vm321, %v317
      %381 = vst [vmem:[%s156 + $0x1e0] sm:$0xff] %v254
      %382 = vst.msk [vmem:[%s156 + $0x1e8] sm:$0xff] %vm321, %v318
      %383 = vst [vmem:[%s156 + $0x1f0] sm:$0xff] %v255
      %384 = vst.msk [vmem:[%s156 + $0x1f8] sm:$0xff] %vm321, %v319
      %s385 = smul.u32 32, %s17
      %p386 = scmp.lt.s32.totalorder %s16, 1
      %s387 = scalar_select %p386, %s16, 1
      %p388 = scmp.lt.s32.totalorder %s385, 31
      %s389 = scalar_select %p388, %s385, 31
      %s390 = smul.addr %s389, 2
      %s391 = smul.addr %s387, 64
      %s392 = sadd.s32 %s390, %s391
      %s393 = smul.addr %s392, 8
      %s394 = scalar_lea.vmem %s1, %s393
      // Predicated region
      $region25: #{tpu_custom_call.1} parent=23 // pred_check
        %p395 = pneg %p72
      $region26: #{tpu_custom_call.1} parent=23 // pred_check_branch
        %397 = sbr.rel (%p395) target = $region28
      $region27: #{tpu_custom_call.1} parent=23 // pred_region
        %s398 = smul.u32 32, %s17
      $region28: #{tpu_custom_call.1} parent=23 // pred_fallthru
        _
    $region24: #{tpu_custom_call.1} parent=5 // pred_fallthru
      _
    %p399 = scmp.le.s32.totalorder 2, %s7
    // Predicated region
    $region29: #{tpu_custom_call.1} parent=5 // pred_check
      %p400 = pneg %p399
    $region30: #{tpu_custom_call.1} parent=5 // pred_check_branch
      %402 = sbr.rel (%p400) target = $region32
    $region31: #{tpu_custom_call.1} parent=5 // pred_region
      %s403 = ssub.s32 %s7, 2
      // Predicated region
      $region33: #{tpu_custom_call.1} parent=31 // pred_check
        %p404 = pneg %p78
      $region34: #{tpu_custom_call.1} parent=31 // pred_check_branch
        %406 = sbr.rel (%p404) target = $region36
      $region35: #{tpu_custom_call.1} parent=31 // pred_region
        %s407 = smul.u32 32, %s19
        %p408 = scmp.lt.s32.totalorder %s18, 1
        %s409 = scalar_select %p408, %s18, 1
        %p410 = scmp.lt.s32.totalorder %s407, 31
        %s411 = scalar_select %p410, %s407, 31
        %s412 = smul.addr %s411, 2
        %s413 = smul.addr %s409, 64
        %s414 = sadd.s32 %s412, %s413
        %s415 = smul.addr %s414, 8
        %s416 = scalar_lea.vmem %s1, %s415
      $region36: #{tpu_custom_call.1} parent=31 // pred_fallthru
        _
    $region32: #{tpu_custom_call.1} parent=5 // pred_fallthru
      _
  $region6: #{tpu_custom_call.1} parent=0 // loop_footer
    %s11 = sadd.s32 1, %s7
  $region7: #{tpu_custom_call.1} parent=0 // loop_footer_branch
    %6 = sbr.rel target = $region3
  $region8: #{tpu_custom_call.1} parent=0 // loop_exit
    _

</llo_original>
